<compile_context>
chip_gen: v7x
topology: tpu7x:2x2x1
jax: 0.10.0
libtpu: 0.0.40
codegen_flags: <defaults>
</compile_context>

<pallas_src>
import functools

import jax
import jax.numpy as jnp
from jax.experimental import pallas as pl
from jax.experimental.pallas import tpu as pltpu

_IGNORE_INDEX = -100  # torch F.cross_entropy default


def _cross_entropy_kernel(logits_ref, labels_ref, out_ref, acc_ref, *,
                          total_rows: int, tile_rows: int):
    """One batch tile: accumulate sum(NLL) and valid-row count into SMEM."""
    step = pl.program_id(0)

    @pl.when(step == 0)
    def _init():
        acc_ref[0] = jnp.float32(0.0)   # running sum of per-row NLL
        acc_ref[1] = jnp.float32(0.0)   # running count of valid rows

    logits = logits_ref[...].astype(jnp.float32)       # (TB, L) f32 compute
    labels = labels_ref[...]                           # (TB, 1) int32
    tb, num_labels = logits.shape

    # Validity: real (non-padded) rows AND non-ignored, in-range labels.
    row = jax.lax.broadcasted_iota(jnp.int32, (tb, 1), 0) + step * tile_rows
    valid = jnp.logical_and(
        row < total_rows,
        jnp.logical_and(labels >= 0, labels < num_labels),
    )                                                  # (TB, 1) bool

    # Numerically stable log-softmax pieces.
    m = jnp.max(logits, axis=-1, keepdims=True)        # (TB, 1)
    shifted = logits - m                                # (TB, L)
    lse = jnp.log(jnp.sum(jnp.exp(shifted), axis=-1, keepdims=True))  # (TB, 1)

    # Gather the label logit with a where+sum (no dynamic gather on TPU).
    col = jax.lax.broadcasted_iota(jnp.int32, (tb, num_labels), 1)
    picked = jnp.sum(jnp.where(col == labels, shifted, 0.0),
                     axis=-1, keepdims=True)            # (TB, 1)

    nll = jnp.where(valid, lse - picked, 0.0)           # masked per-row loss
    acc_ref[0] += jnp.sum(nll)
    acc_ref[1] += jnp.sum(valid.astype(jnp.float32))

    @pl.when(step == pl.num_programs(0) - 1)
    def _finalize():
        # Mean over valid rows (NaN if no valid rows, matching torch).
        out_ref[0] = acc_ref[0] / acc_ref[1]


def _round_up(x: int, m: int) -> int:
    return ((x + m - 1) // m) * m


def intent_detection_loss(logits: jax.Array, labels: jax.Array) -> jax.Array:
    """Mean cross-entropy over (batch, num_labels) logits and (batch,) labels."""
    num_labels = logits.shape[-1]
    logits2d = logits.reshape(-1, num_labels)
    labels2d = labels.reshape(-1, 1).astype(jnp.int32)
    B, L = logits2d.shape

    itemsize = jnp.dtype(logits2d.dtype).itemsize
    row_align = 16 if itemsize < 4 else 8               # bf16 packs 16 rows/vreg
    # Cap each logits tile at ~2 MiB per buffer (double-buffered by Pallas).
    rows_cap = max(row_align,
                   ((2 * 1024 * 1024) // (L * itemsize)) // row_align * row_align)
    tile_rows = min(_round_up(B, row_align), rows_cap)
    grid = (pl.cdiv(B, tile_rows),)

    kernel = functools.partial(_cross_entropy_kernel,
                               total_rows=B, tile_rows=tile_rows)

    out = pl.pallas_call(
        kernel,
        out_shape=jax.ShapeDtypeStruct((1,), jnp.float32),
        grid=grid,
        in_specs=[
            pl.BlockSpec((tile_rows, L), lambda i: (i, 0)),  # logits tile
            pl.BlockSpec((tile_rows, 1), lambda i: (i, 0)),  # labels tile
        ],
        out_specs=pl.BlockSpec(memory_space=pltpu.SMEM),     # scalar in SMEM
        scratch_shapes=[pltpu.SMEM((2,), jnp.float32)],      # [sum, count]
        compiler_params=pltpu.CompilerParams(
            dimension_semantics=("arbitrary",),              # reduction axis
            vmem_limit_bytes=32 * 1024 * 1024,
        ),
    )(logits2d, labels2d)
    return out[0]


def _reference_ce(logits, labels, ignore_index=_IGNORE_INDEX):
    """Pure-JAX reference matching torch.nn.functional.cross_entropy (mean)."""
    valid = labels != ignore_index
    logp = jax.nn.log_softmax(logits.astype(jnp.float32), axis=-1)
    safe = jnp.where(valid, labels, 0)
    nll = -jnp.take_along_axis(logp, safe[:, None], axis=-1)[:, 0]
    return jnp.sum(jnp.where(valid, nll, 0.0)) / jnp.sum(valid)


if __name__ == "__main__":
    # IntentDetectionLoss has no learnable parameters; only num_labels matters.
    num_labels = 16
    batch = 8

    key = jax.random.PRNGKey(0)
    k1, k2, k3, k4 = jax.random.split(key, 4)

    # Case 1: plain batch (all labels valid).
    logits = jax.random.normal(k1, (batch, num_labels), dtype=jnp.float32)
    labels = jax.random.randint(k2, (batch,), 0, num_labels, dtype=jnp.int32)
    loss = intent_detection_loss(logits, labels)
    jax.block_until_ready(loss)
    ref = _reference_ce(logits, labels)
    assert jnp.allclose(loss, ref, atol=1e-5, rtol=1e-5), (loss, ref)

    # Case 2: batch not a multiple of the tile sublane + one ignore_index label
    # (exercises partial-tile masking and ignore handling).
    batch2 = 10
    logits2 = jax.random.normal(k3, (batch2, num_labels), dtype=jnp.float32)
    labels2 = jax.random.randint(k4, (batch2,), 0, num_labels, dtype=jnp.int32)
    labels2 = labels2.at[3].set(_IGNORE_INDEX)
    loss2 = intent_detection_loss(logits2, labels2)
    jax.block_until_ready(loss2)
    ref2 = _reference_ce(logits2, labels2)
    assert jnp.allclose(loss2, ref2, atol=1e-5, rtol=1e-5), (loss2, ref2)

    print("KERNEL_OK")
</pallas_src>

<mosaic_0001>
module attributes {stable_mosaic.version = 11 : i64} {
  func.func @_cross_entropy_kernel(%arg0: i32, %arg1: memref<8x16xf32, #tpu.memory_space<vmem>>, %arg2: memref<8x1xi32, #tpu.memory_space<vmem>>, %arg3: memref<1xf32, #tpu.memory_space<smem>>, %arg4: memref<2xf32, #tpu.memory_space<smem>>) attributes {dimension_semantics = [#tpu.dimension_semantics<arbitrary>], iteration_bounds = array<i64: 1>, scalar_prefetch = 0 : i64, scratch_operands = 1 : i64, tpu.core_type = #tpu.core_type<tc>, window_params = [{transform_indices = @transform_0, window_bounds = array<i64: 8, 16>}, {transform_indices = @transform_1, window_bounds = array<i64: 8, 1>}, {transform_indices = @transform_2, window_bounds = array<i64: 1>}]} {
    %c0_i32 = arith.constant 0 : i32
    %0 = arith.cmpi eq, %arg0, %c0_i32 : i32
    %1 = arith.extui %0 : i1 to i32
    %c0_i32_0 = arith.constant 0 : i32
    %2 = arith.cmpi ne, %1, %c0_i32_0 : i32
    scf.if %2 {
      %cst_17 = arith.constant 0.000000e+00 : f32
      %c0_18 = arith.constant 0 : index
      %54 = memref.load %arg4[%c0_18] : memref<2xf32, #tpu.memory_space<smem>>
      memref.store %cst_17, %arg4[%c0_18] : memref<2xf32, #tpu.memory_space<smem>>
      %cst_19 = arith.constant 0.000000e+00 : f32
      %c1_20 = arith.constant 1 : index
      %55 = memref.load %arg4[%c1_20] : memref<2xf32, #tpu.memory_space<smem>>
      memref.store %cst_19, %arg4[%c1_20] : memref<2xf32, #tpu.memory_space<smem>>
    } else {
    }
    %c0 = arith.constant 0 : index
    %c0_1 = arith.constant 0 : index
    %3 = vector.load %arg1[%c0, %c0_1] : memref<8x16xf32, #tpu.memory_space<vmem>>, vector<8x16xf32>
    %c0_2 = arith.constant 0 : index
    %c0_3 = arith.constant 0 : index
    %4 = vector.load %arg2[%c0_2, %c0_3] : memref<8x1xi32, #tpu.memory_space<vmem>>, vector<8x1xi32>
    %5 = tpu.iota {dimensions = array<i32: 0>} : vector<8x1xi32>
    %c8_i32 = arith.constant 8 : i32
    %6 = arith.muli %arg0, %c8_i32 : i32
    %7 = vector.broadcast %6 : i32 to vector<8x1xi32>
    %8 = arith.addi %5, %7 : vector<8x1xi32>
    %c8_i32_4 = arith.constant 8 : i32
    %9 = vector.broadcast %c8_i32_4 : i32 to vector<8x1xi32>
    %10 = arith.cmpi slt, %8, %9 : vector<8x1xi32>
    %c0_i32_5 = arith.constant 0 : i32
    %11 = vector.broadcast %c0_i32_5 : i32 to vector<8x1xi32>
    %12 = arith.cmpi sge, %4, %11 : vector<8x1xi32>
    %c16_i32 = arith.constant 16 : i32
    %13 = vector.broadcast %c16_i32 : i32 to vector<8x1xi32>
    %14 = arith.cmpi slt, %4, %13 : vector<8x1xi32>
    %15 = arith.andi %12, %14 : vector<8x1xi1>
    %16 = arith.andi %10, %15 : vector<8x1xi1>
    %cst = arith.constant dense<0xFF800000> : vector<8xf32>
    %17 = vector.multi_reduction <maximumf>, %3, %cst [1] : vector<8x16xf32> to vector<8xf32>
    %18 = vector.shape_cast %17 : vector<8xf32> to vector<8x1xf32>
    %19 = vector.broadcast %18 : vector<8x1xf32> to vector<8x16xf32>
    %20 = arith.subf %3, %19 : vector<8x16xf32>
    %21 = math.exp %20 : vector<8x16xf32>
    %cst_6 = arith.constant dense<0.000000e+00> : vector<8xf32>
    %22 = vector.multi_reduction <add>, %21, %cst_6 [1] : vector<8x16xf32> to vector<8xf32>
    %23 = vector.shape_cast %22 : vector<8xf32> to vector<8x1xf32>
    %24 = math.log %23 : vector<8x1xf32>
    %25 = tpu.iota {dimensions = array<i32: 1>} : vector<8x16xi32>
    %26 = vector.broadcast %4 : vector<8x1xi32> to vector<8x16xi32>
    %27 = arith.cmpi eq, %25, %26 : vector<8x16xi32>
    %cst_7 = arith.constant 0.000000e+00 : f32
    %28 = vector.broadcast %cst_7 : f32 to vector<8x16xf32>
    %29 = arith.select %27, %20, %28 : vector<8x16xi1>, vector<8x16xf32>
    %cst_8 = arith.constant dense<0.000000e+00> : vector<8xf32>
    %30 = vector.multi_reduction <add>, %29, %cst_8 [1] : vector<8x16xf32> to vector<8xf32>
    %31 = vector.shape_cast %30 : vector<8xf32> to vector<8x1xf32>
    %32 = arith.subf %24, %31 : vector<8x1xf32>
    %cst_9 = arith.constant 0.000000e+00 : f32
    %33 = vector.broadcast %cst_9 : f32 to vector<8x1xf32>
    %34 = arith.select %16, %32, %33 : vector<8x1xi1>, vector<8x1xf32>
    %c0_10 = arith.constant 0 : index
    %35 = memref.load %arg4[%c0_10] : memref<2xf32, #tpu.memory_space<smem>>
    %36 = vector.shape_cast %34 : vector<8x1xf32> to vector<1x8x1xf32>
    %cst_11 = arith.constant dense<0.000000e+00> : vector<1xf32>
    %37 = vector.multi_reduction <add>, %36, %cst_11 [1, 2] : vector<1x8x1xf32> to vector<1xf32>
    %38 = vector.shape_cast %37 : vector<1xf32> to vector<1x1x1xf32>
    %39 = vector.extract %38[0, 0, 0] : f32 from vector<1x1x1xf32>
    %40 = arith.addf %35, %39 : f32
    %c0_12 = arith.constant 0 : index
    %41 = memref.load %arg4[%c0_12] : memref<2xf32, #tpu.memory_space<smem>>
    memref.store %40, %arg4[%c0_12] : memref<2xf32, #tpu.memory_space<smem>>
    %c1 = arith.constant 1 : index
    %42 = memref.load %arg4[%c1] : memref<2xf32, #tpu.memory_space<smem>>
    %43 = arith.extui %16 : vector<8x1xi1> to vector<8x1xi32>
    %44 = arith.sitofp %43 : vector<8x1xi32> to vector<8x1xf32>
    %45 = vector.shape_cast %44 : vector<8x1xf32> to vector<1x8x1xf32>
    %cst_13 = arith.constant dense<0.000000e+00> : vector<1xf32>
    %46 = vector.multi_reduction <add>, %45, %cst_13 [1, 2] : vector<1x8x1xf32> to vector<1xf32>
    %47 = vector.shape_cast %46 : vector<1xf32> to vector<1x1x1xf32>
    %48 = vector.extract %47[0, 0, 0] : f32 from vector<1x1x1xf32>
    %49 = arith.addf %42, %48 : f32
    %c1_14 = arith.constant 1 : index
    %50 = memref.load %arg4[%c1_14] : memref<2xf32, #tpu.memory_space<smem>>
    memref.store %49, %arg4[%c1_14] : memref<2xf32, #tpu.memory_space<smem>>
    %c0_i32_15 = arith.constant 0 : i32
    %51 = arith.cmpi eq, %arg0, %c0_i32_15 : i32
    %52 = arith.extui %51 : i1 to i32
    %c0_i32_16 = arith.constant 0 : i32
    %53 = arith.cmpi ne, %52, %c0_i32_16 : i32
    scf.if %53 {
      %c0_17 = arith.constant 0 : index
      %54 = memref.load %arg4[%c0_17] : memref<2xf32, #tpu.memory_space<smem>>
      %c1_18 = arith.constant 1 : index
      %55 = memref.load %arg4[%c1_18] : memref<2xf32, #tpu.memory_space<smem>>
      %56 = arith.divf %54, %55 : f32
      %c0_19 = arith.constant 0 : index
      %57 = memref.load %arg3[%c0_19] : memref<1xf32, #tpu.memory_space<smem>>
      memref.store %56, %arg3[%c0_19] : memref<1xf32, #tpu.memory_space<smem>>
    } else {
    }
    return
  }
  func.func @transform_0(%arg0: i32) -> (i32, i32) {
    %c0_i32 = arith.constant 0 : i32
    %c0_i32_0 = arith.constant 0 : i32
    return %arg0, %c0_i32 : i32, i32
  }
  func.func @transform_1(%arg0: i32) -> (i32, i32) {
    %c0_i32 = arith.constant 0 : i32
    %c0_i32_0 = arith.constant 0 : i32
    return %arg0, %c0_i32 : i32, i32
  }
  func.func @transform_2(%arg0: i32) -> i32 {
    %c0_i32 = arith.constant 0 : i32
    %c0_i32_0 = arith.constant 0 : i32
    return %c0_i32 : i32
  }
}

</mosaic_0001>

<llo_original>
// kernel: tpu_custom_call.1
$region0: #{tpu_custom_call.1}
  #allocation0 [shape = 'u32[]', space=smem, size = 0x4, offset = 0x4, fixed_abs, tag = 'smem constant byte address 0x4 - core index']
  #allocation1 [shape = 'u32[144,128]{1,0:T(1,128)}', space=vmem, size = 0x12000, scoped, tag = 'internal scratch']
  #allocation2 [shape = 'f32[2]{0:T(128)}', space=smem, size = 0x200, scoped, tag = 'scratch operand']
  %s0 = inlined_call_operand.vmem [shape: f32[8,16], index: 0, kind: input, shape index: {}]
  %s1 = inlined_call_operand.vmem [shape: s32[8,1], index: 1, kind: input, shape index: {}]
  %s2 = inlined_call_operand.hbm [shape: f32[1], index: 2, kind: output, shape index: {}]
  %s3 = sld [smem:[#allocation0]]
  $region26: #{tpu_custom_call.1} parent=0
    _
  %s5 = ssub.s32 1, %s3
  %s6 = scalar_select 0, %s5, %s3
  $region1: #{tpu_custom_call.1} parent=0
    #allocation3 [shape = 'u8[512]{0}', space=smem, size = 0x200, scoped, tag = 'output window, operand 0, single buffered']
    #allocation4 [shape = 's32[1]{0}', space=sflag, size = 0x4, scoped, tag = 'scoped memory for tpu_custom_call.1']
    %7 = vsyncpa [#allocation4], 0
    // Predicated region
    $region2: #{tpu_custom_call.1} parent=1 // pred_check
      _
    $region3: #{tpu_custom_call.1} parent=1 // pred_check_branch
      %9 = sbr.rel (0) target = $region5
    $region4: #{tpu_custom_call.1} parent=1 // pred_region
      _
    $region5: #{tpu_custom_call.1} parent=1 // pred_fallthru
      _
    // Predicated region
    $region6: #{tpu_custom_call.1} parent=1 // pred_check
      _
    $region7: #{tpu_custom_call.1} parent=1 // pred_check_branch
      %11 = sbr.rel (0) target = $region9
    $region8: #{tpu_custom_call.1} parent=1 // pred_region
      _
    $region9: #{tpu_custom_call.1} parent=1 // pred_fallthru
      _
    %p12 = scmp.eq.s32.totalorder 0, 0
    // Predicated region
    $region10: #{tpu_custom_call.1} parent=1 // pred_check
      %p13 = pneg %p12
    $region11: #{tpu_custom_call.1} parent=1 // pred_check_branch
      %15 = sbr.rel (%p13) target = $region13
    $region12: #{tpu_custom_call.1} parent=1 // pred_region
      %s16 = scalar_lea.smem [#allocation2], 0
      %17 = sst [smem:[%s16]] 0.0
      %s18 = scalar_lea.smem [#allocation2], 1
      %19 = sst [smem:[%s18]] 0.0
    $region13: #{tpu_custom_call.1} parent=1 // pred_fallthru
      _
    %v20 = vld [vmem:[%s0] sm:$0xff]
    %v21 = vld [vmem:[%s1] sm:$0xff]
    %v22 = vlaneseq
    %v23 = vshrl.u32 %v22, 7
    %s24 = smul.u32 0, 8
    %v25 = vstv %s24
    %v26 = vadd.s32 %v23, %v25
    %vm27 = vcmp.lt.s32.totalorder %v26, 8
    %vm28 = vcmp.ge.s32.totalorder %v21, 0
    %vm29 = vcmp.lt.s32.totalorder %v21, 16
    %vm30 = vmand %vm28, %vm29
    %vm31 = vmand %vm27, %vm30
    %vm32 = vcmask 130048
    %v33 = vsel %vm32, %v20, -inf
    %34 = vmax.xlane.f32.xlu0 %v33
    %v35 = vpop.xlane.xlu0 %34
    %v36 = vsub.f32 %v20, %v35
    %v37 = vmul.f32 %v36, 1.442695
    %v38 = vpow.pop %v37
    %v39 = vsel %vm32, %v38, 0.0
    %40 = vadd.xlane.f32.xlu0 %v39
    %v41 = vpop.xlane.xlu0 %40
    %v42 = vlog2.pop %v41
    %v43 = vmul.f32 %v42, 0.6931472
    %v44 = vlaneseq
    %v45 = vand.u32 %v44, 127
    %46 = vset.pattern.permute.xlu0 0
    %47 = vperm.xlu0 %46, %v21
    %v48 = vpop.permute.xlu0 %47
    %vm49 = vcmp.eq.s32.totalorder %v45, %v48
    %v50 = vsel %vm49, %v36, 0.0
    %v51 = vsel %vm32, %v50, 0.0
    %52 = vadd.xlane.f32.xlu0 %v51
    %v53 = vpop.xlane.xlu0 %52
    %v54 = vsub.f32 %v43, %v53
    %v55 = vsel %vm31, %v54, 0.0
    %s56 = sld [smem:[#allocation2]]
    %vm57 = vcmask 7168
    %v58 = vsel %vm57, %v55, 0.0
    %59 = vadd.xlane.f32.xlu0 %v58
    %v60 = vpop.xlane.xlu0 %59
    %v61 = vrot.slane %v60, 4
    %v62 = vadd.f32 %v60, %v61
    %v63 = vrot.slane %v62, 2
    %v64 = vadd.f32 %v62, %v63
    %v65 = vrot.slane %v64, 1
    %v66 = vadd.f32 %v64, %v65
    %s67 = vtos %v66
    %s68 = sadd.f32 %s56, %s67
    %s69 = scalar_lea.smem [#allocation2], 0
    %70 = sst [smem:[%s69]] %s68
    %s71 = sld [smem:[#allocation2 + $0x1]]
    %v72 = vsel %vm31, 1, 0
    %v73 = vcvt.s32.f32 %v72
    %v74 = vsel %vm57, %v73, 0.0
    %75 = vadd.xlane.f32.xlu0 %v74
    %v76 = vpop.xlane.xlu0 %75
    %v77 = vrot.slane %v76, 4
    %v78 = vadd.f32 %v76, %v77
    %v79 = vrot.slane %v78, 2
    %v80 = vadd.f32 %v78, %v79
    %v81 = vrot.slane %v80, 1
    %v82 = vadd.f32 %v80, %v81
    %s83 = vtos %v82
    %s84 = sadd.f32 %s71, %s83
    %s85 = scalar_lea.smem [#allocation2], 1
    %86 = sst [smem:[%s85]] %s84
    // Predicated region
    $region14: #{tpu_custom_call.1} parent=1 // pred_check
      %p87 = pneg %p12
    $region15: #{tpu_custom_call.1} parent=1 // pred_check_branch
      %89 = sbr.rel (%p87) target = $region17
    $region16: #{tpu_custom_call.1} parent=1 // pred_region
      %s90 = sld [smem:[#allocation2]]
      %s91 = sld [smem:[#allocation2 + $0x1]]
      %v92 = vstv %s91
      %v93 = vrcp.pop %v92
      %s94 = vtos %v93
      %s95 = smul.f32 %s90, %s94
      %s96 = scalar_lea.smem [#allocation3], 0
      %97 = sst [smem:[%s96]] %s95
    $region17: #{tpu_custom_call.1} parent=1 // pred_fallthru
      _
    // Predicated region
    $region18: #{tpu_custom_call.1} parent=1 // pred_check
      _
    $region19: #{tpu_custom_call.1} parent=1 // pred_check_branch
      %99 = sbr.rel (0) target = $region21
    $region20: #{tpu_custom_call.1} parent=1 // pred_region
      %s101 = ssub.s32 16, 16
      %102 = vsyncadd [#allocation4], %s101
      %105 = dma.smem_to_hbm [#allocation3], 16, %s2, [#allocation4]
    $region21: #{tpu_custom_call.1} parent=1 // pred_fallthru
      _
    // Predicated region
    $region22: #{tpu_custom_call.1} parent=1 // pred_check
      _
    $region23: #{tpu_custom_call.1} parent=1 // pred_check_branch
      %107 = sbr.rel (0) target = $region25
    $region24: #{tpu_custom_call.1} parent=1 // pred_region
      %108 = dma.done [#allocation4], 16
    $region25: #{tpu_custom_call.1} parent=1 // pred_fallthru
      _
    %109 = sfence
    %110 = vsyncpa [#allocation4], 1

</llo_original>
